<compile_context>
chip_gen: v6e
topology: v6e:2x2x1
jax: 0.10.0
libtpu: 0.0.40
codegen_flags: <defaults>
</compile_context>

<pallas_src>
import functools

import jax
import jax.numpy as jnp
from jax import lax
from jax.experimental import pallas as pl
from jax.experimental.pallas import tpu as pltpu


def _phuber_gce_kernel(x_ref, t_ref, o_ref, *,
                       q, tau, prob_thresh, boundary, n_rows, tile_n, ragged):
    i = pl.program_id(0)

    x = x_ref[...]                          # (tile_n, C), native dtype
    t = t_ref[...]                          # (tile_n, 1) int32
    tn, c = x.shape

    # Numerically-stable log-softmax pieces. Row max is exact in the native dtype;
    # subtraction / exp / reductions run in f32. Only xs and e are full-tile f32.
    m = jnp.max(x, axis=1, keepdims=True)                               # (tile_n, 1)
    xs = x.astype(jnp.float32) - m.astype(jnp.float32)                  # (tile_n, C)
    e = jnp.exp(xs)                                                     # (tile_n, C)  EUP
    denom = jnp.sum(e, axis=1, keepdims=True)                           # (tile_n, 1)

    # Gather (x_true - m) with a (1, C) lane-iota one-hot; no full prob matrix, no divide.
    cols = lax.broadcasted_iota(jnp.int32, (1, c), 1)                   # class ids on lanes
    xt = jnp.sum(jnp.where(cols == t, xs, 0.0), axis=1, keepdims=True)  # (tile_n, 1)

    # log p_true; p_true and p_true**q each cost one exp on the narrow column.
    logp = xt - jnp.log(denom)                                          # (tile_n, 1)
    p = jnp.exp(logp)
    p_pow = jnp.exp(jnp.float32(q) * logp)

    loss = jnp.where(p <= prob_thresh,
                     -jnp.float32(tau) * p + jnp.float32(boundary),
                     (1.0 - p_pow) / jnp.float32(q))                    # (tile_n, 1)

    def write(partial):
        # Lane-dense, unmasked (8,128) store of this tile's partial sum.
        o_ref[...] = jnp.full((8, 128), partial, jnp.float32)

    if ragged:
        last = pl.num_programs(0) - 1

        @pl.when(i != last)
        def _():
            write(jnp.sum(loss))

        @pl.when(i == last)
        def _():
            # Rows past N in the last block hold undefined data; mask them out here.
            rows = i * tile_n + lax.broadcasted_iota(jnp.int32, (tn, 1), 0)
            write(jnp.sum(jnp.where(rows < n_rows, loss, 0.0)))
    else:
        write(jnp.sum(loss))


def phuber_gce_loss(logits, target, q=0.7, tau=10.0, tile_n=None):
    """logits: (N, C); target: (N,) int in [0, C-1]. Returns scalar f32 loss (mean)."""
    n, c = logits.shape
    dtype_bytes = jnp.dtype(logits.dtype).itemsize
    row_align = max(8, 32 // dtype_bytes)   # f32 -> 8, bf16 -> 16, int8/fp8 -> 32

    if tile_n is None:
        # Size by the f32 working-set row cost (the xs / exp intermediates dominate).
        # ~8 MiB per full-tile f32 array keeps 2x input buffers + 2 f32 intermediates
        # well inside v7x's 64 MiB VMEM; no artificial row cap for small C.
        per_tile_f32_budget = 8 * 1024 * 1024
        tile_n = max(1, per_tile_f32_budget // max(1, c * 4))
    tile_n = max(row_align, (int(tile_n) // row_align) * row_align)

    if tile_n >= n:
        tile_n = n                           # single block; dim == full array dim is always legal
    num_tiles = -(-n // tile_n)
    ragged = (num_tiles * tile_n != n)       # last block overruns N; kernel masks those rows

    t2d = target.astype(jnp.int32).reshape(n, 1)

    prob_thresh = float(tau ** (1.0 / (q - 1.0)))
    boundary = float(tau * prob_thresh + (1.0 - prob_thresh ** q) / q)

    kernel = functools.partial(
        _phuber_gce_kernel,
        q=float(q), tau=float(tau), prob_thresh=prob_thresh,
        boundary=boundary, n_rows=n, tile_n=tile_n, ragged=ragged)

    cost = pl.CostEstimate(
        flops=int(5 * n * c + 12 * n),
        transcendentals=int(n * c + 3 * n),
        bytes_accessed=int(n * c * dtype_bytes + n * 4 + num_tiles * 8 * 128 * 4),
    )

    partials = pl.pallas_call(
        kernel,
        out_shape=jax.ShapeDtypeStruct((num_tiles * 8, 128), jnp.float32),
        grid_spec=pltpu.PrefetchScalarGridSpec(
            num_scalar_prefetch=0,
            grid=(num_tiles,),
            in_specs=[
                pl.BlockSpec((tile_n, c), lambda i: (i, 0)),   # logits tile (VMEM)
                pl.BlockSpec((tile_n, 1), lambda i: (i, 0)),   # targets tile (VMEM)
            ],
            out_specs=pl.BlockSpec((8, 128), lambda i: (i, 0)),  # per-tile partial sum
        ),
        compiler_params=pltpu.CompilerParams(
            dimension_semantics=("parallel",),   # independent tiles -> megacore shard on v7x
            vmem_limit_bytes=48 * 1024 * 1024,
        ),
        cost_estimate=cost,
    )(logits, t2d)

    # Tiny final reduction + mean in plain JAX (num_tiles values).
    per_tile = partials.reshape(num_tiles, 8, 128)[:, 0, 0]
    return jnp.sum(per_tile) / jnp.float32(n)


def _reference(logits, target, q=0.7, tau=10.0):
    p = jax.nn.softmax(logits.astype(jnp.float32), axis=1)
    p_true = p[jnp.arange(logits.shape[0]), target]
    thresh = tau ** (1.0 / (q - 1.0))
    boundary = tau * thresh + (1.0 - thresh ** q) / q
    loss = jnp.where(p_true <= thresh,
                     -tau * p_true + boundary,
                     (1.0 - p_true ** q) / q)
    return jnp.mean(loss)


if __name__ == "__main__":
    key = jax.random.PRNGKey(0)
    k1, k2, k3, k4 = jax.random.split(key, 4)

    # Small shape consistent with the module: (minibatch, C), single-tile path.
    N, C = 8, 32
    logits = jax.random.normal(k1, (N, C), dtype=jnp.float32)
    target = jax.random.randint(k2, (N,), 0, C, dtype=jnp.int32)
    loss = phuber_gce_loss(logits, target)
    jax.block_until_ready(loss)
    ref = _reference(logits, target)
    assert jnp.allclose(loss, ref, atol=1e-5, rtol=1e-5), (loss, ref)

    # Multi-tile ragged path: per-tile partial sums + last-tile row masking (no jnp.pad).
    N2, C2 = 300, 160
    logits2 = jax.random.normal(k3, (N2, C2), dtype=jnp.float32)
    target2 = jax.random.randint(k4, (N2,), 0, C2, dtype=jnp.int32)
    loss2 = phuber_gce_loss(logits2, target2, tile_n=128)
    jax.block_until_ready(loss2)
    ref2 = _reference(logits2, target2)
    assert jnp.allclose(loss2, ref2, atol=1e-5, rtol=1e-5), (loss2, ref2)

    print("KERNEL_OK")
</pallas_src>

<mosaic_0001>
module attributes {stable_mosaic.version = 11 : i64} {
  func.func @_phuber_gce_kernel(%arg0: i32, %arg1: memref<8x32xf32, #tpu.memory_space<vmem>>, %arg2: memref<8x1xi32, #tpu.memory_space<vmem>>, %arg3: memref<8x128xf32, #tpu.memory_space<vmem>>) attributes {dimension_semantics = [#tpu.dimension_semantics<parallel>], iteration_bounds = array<i64: 1>, scalar_prefetch = 0 : i64, scratch_operands = 0 : i64, tpu.core_type = #tpu.core_type<tc>, window_params = [{transform_indices = @transform_0, window_bounds = array<i64: 8, 32>}, {transform_indices = @transform_1, window_bounds = array<i64: 8, 1>}, {transform_indices = @transform_2, window_bounds = array<i64: 8, 128>}]} {
    %c0 = arith.constant 0 : index
    %c0_0 = arith.constant 0 : index
    %0 = vector.load %arg1[%c0, %c0_0] : memref<8x32xf32, #tpu.memory_space<vmem>>, vector<8x32xf32>
    %c0_1 = arith.constant 0 : index
    %c0_2 = arith.constant 0 : index
    %1 = vector.load %arg2[%c0_1, %c0_2] : memref<8x1xi32, #tpu.memory_space<vmem>>, vector<8x1xi32>
    %cst = arith.constant dense<0xFF800000> : vector<8xf32>
    %2 = vector.multi_reduction <maximumf>, %0, %cst [1] : vector<8x32xf32> to vector<8xf32>
    %3 = vector.shape_cast %2 : vector<8xf32> to vector<8x1xf32>
    %4 = vector.broadcast %3 : vector<8x1xf32> to vector<8x32xf32>
    %5 = arith.subf %0, %4 : vector<8x32xf32>
    %6 = math.exp %5 : vector<8x32xf32>
    %cst_3 = arith.constant dense<0.000000e+00> : vector<8xf32>
    %7 = vector.multi_reduction <add>, %6, %cst_3 [1] : vector<8x32xf32> to vector<8xf32>
    %8 = vector.shape_cast %7 : vector<8xf32> to vector<8x1xf32>
    %9 = tpu.iota {dimensions = array<i32: 1>} : vector<1x32xi32>
    %10 = vector.broadcast %9 : vector<1x32xi32> to vector<8x32xi32>
    %11 = vector.broadcast %1 : vector<8x1xi32> to vector<8x32xi32>
    %12 = arith.cmpi eq, %10, %11 : vector<8x32xi32>
    %cst_4 = arith.constant 0.000000e+00 : f32
    %13 = vector.broadcast %cst_4 : f32 to vector<8x32xf32>
    %14 = arith.select %12, %5, %13 : vector<8x32xi1>, vector<8x32xf32>
    %cst_5 = arith.constant dense<0.000000e+00> : vector<8xf32>
    %15 = vector.multi_reduction <add>, %14, %cst_5 [1] : vector<8x32xf32> to vector<8xf32>
    %16 = vector.shape_cast %15 : vector<8xf32> to vector<8x1xf32>
    %17 = math.log %8 : vector<8x1xf32>
    %18 = arith.subf %16, %17 : vector<8x1xf32>
    %19 = math.exp %18 : vector<8x1xf32>
    %cst_6 = arith.constant 0.699999988 : f32
    %20 = vector.broadcast %cst_6 : f32 to vector<8x1xf32>
    %21 = arith.mulf %20, %18 : vector<8x1xf32>
    %22 = math.exp %21 : vector<8x1xf32>
    %cst_7 = arith.constant 4.64158889E-4 : f32
    %23 = vector.broadcast %cst_7 : f32 to vector<8x1xf32>
    %24 = arith.cmpf ole, %19, %23 : vector<8x1xf32>
    %cst_8 = arith.constant 0.000000e+00 : f32
    %cst_9 = arith.constant 1.000000e+01 : f32
    %25 = arith.subf %cst_8, %cst_9 : f32
    %26 = vector.broadcast %25 : f32 to vector<8x1xf32>
    %27 = arith.mulf %26, %19 : vector<8x1xf32>
    %cst_10 = arith.constant 1.42658222 : f32
    %28 = vector.broadcast %cst_10 : f32 to vector<8x1xf32>
    %29 = arith.addf %27, %28 : vector<8x1xf32>
    %cst_11 = arith.constant 1.000000e+00 : f32
    %30 = vector.broadcast %cst_11 : f32 to vector<8x1xf32>
    %31 = arith.subf %30, %22 : vector<8x1xf32>
    %cst_12 = arith.constant 0.699999988 : f32
    %32 = vector.broadcast %cst_12 : f32 to vector<8x1xf32>
    %33 = arith.divf %31, %32 : vector<8x1xf32>
    %34 = arith.select %24, %29, %33 : vector<8x1xi1>, vector<8x1xf32>
    %35 = vector.shape_cast %34 : vector<8x1xf32> to vector<1x8x1xf32>
    %cst_13 = arith.constant dense<0.000000e+00> : vector<1xf32>
    %36 = vector.multi_reduction <add>, %35, %cst_13 [1, 2] : vector<1x8x1xf32> to vector<1xf32>
    %37 = vector.shape_cast %36 : vector<1xf32> to vector<1x1x1xf32>
    %38 = vector.extract %37[0, 0, 0] : f32 from vector<1x1x1xf32>
    %39 = vector.broadcast %38 : f32 to vector<8x128xf32>
    %c0_14 = arith.constant 0 : index
    %c0_15 = arith.constant 0 : index
    %40 = vector.load %arg3[%c0_14, %c0_15] : memref<8x128xf32, #tpu.memory_space<vmem>>, vector<8x128xf32>
    tpu.vector_store %arg3[%c0_14, %c0_15], %39 {strides = array<i32>} : memref<8x128xf32, #tpu.memory_space<vmem>>, vector<8x128xf32>,
    return
  }
  func.func @transform_0(%arg0: i32) -> (i32, i32) {
    %c0_i32 = arith.constant 0 : i32
    %c0_i32_0 = arith.constant 0 : i32
    return %arg0, %c0_i32 : i32, i32
  }
  func.func @transform_1(%arg0: i32) -> (i32, i32) {
    %c0_i32 = arith.constant 0 : i32
    %c0_i32_0 = arith.constant 0 : i32
    return %arg0, %c0_i32 : i32, i32
  }
  func.func @transform_2(%arg0: i32) -> (i32, i32) {
    %c0_i32 = arith.constant 0 : i32
    %c0_i32_0 = arith.constant 0 : i32
    return %arg0, %c0_i32 : i32, i32
  }
}

</mosaic_0001>

<llo_original>
// kernel: tpu_custom_call.1
$region0: #{tpu_custom_call.1}
  #allocation0 [shape = 'u32[]', space=smem, size = 0x4, offset = 0x4, fixed_abs, tag = 'smem constant byte address 0x4 - core index']
  #allocation1 [shape = 'u32[144,128]{1,0:T(1,128)}', space=vmem, size = 0x12000, scoped, tag = 'internal scratch']
  %s0 = inlined_call_operand.vmem [shape: f32[8,32], index: 0, kind: input, shape index: {}]
  %s1 = inlined_call_operand.vmem [shape: s32[8,1], index: 1, kind: input, shape index: {}]
  %s2 = inlined_call_operand.hbm [shape: f32[8,128], index: 2, kind: output, shape index: {}]
  %s3 = sld [smem:[#allocation0]]
  $region18: #{tpu_custom_call.1} parent=0
    _
  %s5 = ssub.s32 1, %s3
  %s6 = scalar_select 0, %s5, %s3
  $region1: #{tpu_custom_call.1} parent=0
    #allocation2 [shape = 'u8[4096]{0}', space=vmem, size = 0x1000, scoped, tag = 'output window, operand 0, single buffered']
    #allocation3 [shape = 's32[1]{0}', space=sflag, size = 0x4, scoped, tag = 'scoped memory for tpu_custom_call.1']
    %7 = vsyncpa [#allocation3], 0
    // Predicated region
    $region2: #{tpu_custom_call.1} parent=1 // pred_check
      _
    $region3: #{tpu_custom_call.1} parent=1 // pred_check_branch
      %9 = sbr.rel (0) target = $region5
    $region4: #{tpu_custom_call.1} parent=1 // pred_region
      _
    $region5: #{tpu_custom_call.1} parent=1 // pred_fallthru
      _
    // Predicated region
    $region6: #{tpu_custom_call.1} parent=1 // pred_check
      _
    $region7: #{tpu_custom_call.1} parent=1 // pred_check_branch
      %11 = sbr.rel (0) target = $region9
    $region8: #{tpu_custom_call.1} parent=1 // pred_region
      _
    $region9: #{tpu_custom_call.1} parent=1 // pred_fallthru
      _
    %v12 = vld [vmem:[%s0] sm:$0xff]
    %v13 = vld [vmem:[%s1] sm:$0xff]
    %vm14 = vcmask 261120
    %v15 = vsel %vm14, %v12, -inf
    %16 = vmax.xlane.f32.xlu0 %v15
    %v17 = vpop.xlane.xlu0 %16
    %v18 = vsub.f32 %v12, %v17
    %v19 = vmul.f32 %v18, 1.442695
    %v20 = vpow.pop %v19
    %v21 = vsel %vm14, %v20, 0.0
    %22 = vadd.xlane.f32.xlu0 %v21
    %v23 = vpop.xlane.xlu0 %22
    %v24 = vlaneseq
    %v25 = vand.u32 %v24, 127
    %26 = vset.pattern.permute.xlu0 0
    %27 = vperm.xlu0 %26, %v13
    %v28 = vpop.permute.xlu0 %27
    %vm29 = vcmp.eq.s32.totalorder %v25, %v28
    %v30 = vsel %vm29, %v18, 0.0
    %v31 = vsel %vm14, %v30, 0.0
    %32 = vadd.xlane.f32.xlu0 %v31
    %v33 = vpop.xlane.xlu0 %32
    %v34 = vlog2.pop %v23
    %v35 = vmul.f32 %v34, 0.6931472
    %v36 = vsub.f32 %v33, %v35
    %v37 = vmul.f32 %v36, 1.442695
    %v38 = vpow.pop %v37
    %v39 = vmul.f32 %v36, 0.7
    %v40 = vmul.f32 %v39, 1.442695
    %v41 = vpow.pop %v40
    %vm42 = vcmp.le.f32.partialorder %v38, 0.0004641589
    %v43 = vmul.f32 %v38, -10.0
    %v44 = vadd.f32 %v43, 1.4265822
    %v45 = vsub.f32 1.0, %v41
    %v46 = vrcp.pop 0.7
    %v47 = vmul.f32 %v45, %v46
    %v48 = vsel %vm42, %v44, %v47
    %vm49 = vcmask 7168
    %v50 = vsel %vm49, %v48, 0.0
    %51 = vadd.xlane.f32.xlu0 %v50
    %v52 = vpop.xlane.xlu0 %51
    %v53 = vrot.slane %v52, 4
    %v54 = vadd.f32 %v52, %v53
    %v55 = vrot.slane %v54, 2
    %v56 = vadd.f32 %v54, %v55
    %v57 = vrot.slane %v56, 1
    %v58 = vadd.f32 %v56, %v57
    %s59 = vtos %v58
    %v60 = vstv %s59
    %61 = vst [vmem:[#allocation2] sm:$0xff] %v60
    // Predicated region
    $region10: #{tpu_custom_call.1} parent=1 // pred_check
      _
    $region11: #{tpu_custom_call.1} parent=1 // pred_check_branch
      %63 = sbr.rel (0) target = $region13
    $region12: #{tpu_custom_call.1} parent=1 // pred_region
      %s65 = ssub.s32 128, 128
      %66 = vsyncadd [#allocation3], %s65
      %s68 = sshll.u32 [#allocation2], 4
      %s69 = int_to_ptr.vmem [resolvable:$true] %s68
      %71 = dma.vmem_to_hbm [thread:$0]  %s69, 128, %s2, [#allocation3]
    $region13: #{tpu_custom_call.1} parent=1 // pred_fallthru
      _
    // Predicated region
    $region14: #{tpu_custom_call.1} parent=1 // pred_check
      _
    $region15: #{tpu_custom_call.1} parent=1 // pred_check_branch
      %73 = sbr.rel (0) target = $region17
    $region16: #{tpu_custom_call.1} parent=1 // pred_region
      %74 = dma.done [#allocation3], 128
    $region17: #{tpu_custom_call.1} parent=1 // pred_fallthru
      _
    %75 = vsyncpa [#allocation3], 1

</llo_original>
